<compile_context>
chip_gen: v6e
topology: v6e:2x2x1
jax: 0.10.0
libtpu: 0.0.40
codegen_flags: <defaults>
</compile_context>

<pallas_src>
import numpy as np
import jax
import jax.numpy as jnp
from jax.experimental import pallas as pl
from jax.experimental.pallas import tpu as pltpu

_PI = float(np.pi)
_INV_PI = 1.0 / _PI
_INV_2PI = 1.0 / (2.0 * _PI)
_T3P8 = 2.414213562373095      # tan(3*pi/8)
_TP8 = 0.4142135623730951      # tan(pi/8)
NORMALIZE_ANGLES = True        # mirrors bgflow default normalize_angles=True
_EPS = 1e-7


# ----------------------------------------------------------------------------
# atan2 from Mosaic-supported primitives.  Cephes-style argument reduction with
# cross-multiplied threshold tests and a single select-num/select-den division
# (one approx EUP reciprocal + one Newton step) per call.  ~f32 accuracy.
# ----------------------------------------------------------------------------
def _atan2(y, x):
    ay = jnp.abs(y)
    ax = jnp.abs(x)
    big = ay > _T3P8 * ax                       # |y/x| > tan(3*pi/8)
    mid = ay > _TP8 * ax                        # |y/x| > tan(pi/8)
    num = jnp.where(big, -ax, jnp.where(mid, ay - ax, ay))
    den = jnp.where(big, ay, jnp.where(mid, ay + ax, ax))
    den = jnp.maximum(den, 1e-30)
    inv = pl.reciprocal(den, approx=True)
    inv = inv * (2.0 - den * inv)               # one Newton step -> ~1e-7 rel
    xr = num * inv
    z = xr * xr
    p = (((8.05374449538e-2 * z - 1.38776856032e-1) * z
          + 1.99777106478e-1) * z - 3.33329491539e-1) * z * xr + xr
    r = jnp.where(big, 0.5 * _PI, jnp.where(mid, 0.25 * _PI, 0.0)) + p
    r = jnp.where(x < 0.0, _PI - r, r)          # quadrant fix
    return jnp.where(y < 0.0, -r, r)            # sign of y


# ------------------------- 3-vector helpers (tuples of 2-D planes) -----------
def _sub3(a, b):
    return (a[0] - b[0], a[1] - b[1], a[2] - b[2])


def _dot3(a, b):
    return a[0] * b[0] + a[1] * b[1] + a[2] * b[2]


def _cross3(a, b):
    return (a[1] * b[2] - a[2] * b[1],
            a[2] * b[0] - a[0] * b[2],
            a[0] * b[1] - a[1] * b[0])


def _scale3(a, s):
    return (a[0] * s, a[1] * s, a[2] * s)


# ----------------------------------------------------------------------------
# Layout-agnostic Pallas kernel.
#   pts_ref: (12, D0, D1)  packed gathered points [a.xyz, b.xyz, c.xyz, d.xyz]
#   out_ref: (4,  D0, D1)  planes [bond, angle, torsion, per-atom logdet]
# One of (D0, D1) is the batch tile, the other the padded conditioned-atom axis;
# the math is purely elementwise so the same kernel serves both layouts.
# ----------------------------------------------------------------------------
def _ic_kernel(pts_ref, out_ref):
    a = (pts_ref[0], pts_ref[1], pts_ref[2])
    b = (pts_ref[3], pts_ref[4], pts_ref[5])
    c = (pts_ref[6], pts_ref[7], pts_ref[8])
    d = (pts_ref[9], pts_ref[10], pts_ref[11])

    # shared edge vectors (reused by bond, angle and dihedral)
    r_ab = _sub3(a, b)            # a - b
    r_cb = _sub3(c, b)            # c - b
    r_dc = _sub3(d, c)            # d - c

    d2_ab = _dot3(r_ab, r_ab)
    d2_cb = _dot3(r_cb, r_cb)

    # Only two EUP rsqrt ops; everything else derived with VPU multiplies.
    inv_ab = jax.lax.rsqrt(jnp.maximum(d2_ab, _EPS))
    inv_cb = jax.lax.rsqrt(jnp.maximum(d2_cb, _EPS))

    # -------- bond: |a - b| (store immediately; shortest live range) --------
    out_ref[0] = d2_ab * inv_ab

    # -------- angle at b between (a-b) and (c-b) --------
    cos_a = _dot3(r_ab, r_cb) * (inv_ab * inv_cb)
    cos_a = jnp.clip(cos_a, -1.0 + _EPS, 1.0 - _EPS)
    sin_a = jnp.sqrt(1.0 - cos_a * cos_a)
    ang = _atan2(sin_a, cos_a)                       # arccos(cos_a)
    out_ref[1] = ang * _INV_PI if NORMALIZE_ANGLES else ang

    # -------- dihedral a-b-c-d (praxeolitic formula) --------
    b1n = _scale3(r_cb, inv_cb)
    v = _sub3(r_ab, _scale3(b1n, _dot3(r_ab, b1n)))
    w = _sub3(r_dc, _scale3(b1n, _dot3(r_dc, b1n)))
    tx = _dot3(v, w)
    ty = _dot3(_cross3(b1n, v), w)
    tors = _atan2(ty, tx)                            # (-pi, pi]
    out_ref[2] = (tors + _PI) * _INV_2PI if NORMALIZE_ANGLES else tors

    # per-atom log|det d(d,a,t)/d(x_a)| = -(2 log d + log sin a), fused log;
    # emitted lane-dense, summed (with padding sliced off) in the wrapper.
    out_ref[3] = -jnp.log(jnp.maximum(d2_ab * sin_a, _EPS))


def _pick_batch_tile(batch, unit, cap, per_row_bytes, budget_bytes):
    """Power-of-two batch tile: grow while the (double-buffered) per-step
    footprint stays under budget, then shrink so the grid has >= 2 steps
    whenever the batch allows (so v7x's two TensorCores both get work)."""
    tb = unit
    while tb * 2 <= cap and (tb * 2) * per_row_bytes <= budget_bytes:
        tb *= 2
    while tb > unit and -(-batch // tb) < 2:
        tb //= 2
    return tb


# ----------------------------------------------------------------------------
# Wrapper (glue): static z-matrix gather, pallas_call, frame/Euler block,
# tfep-style packing.
# ----------------------------------------------------------------------------
def cartesian_to_internal(x, z_matrix):
    """Forward pass of _CartesianToInternalCoordinateTransformer.

    x: (batch, n_atoms*3) float32 cartesian coordinates.
    Returns (ics, log_det_J, x0, R) with the same shapes as the torch module.
    """
    z = np.asarray(z_matrix, dtype=np.int64)
    batch = x.shape[0]
    n_atoms = x.shape[1] // 3
    n_cond = n_atoms - 3

    x2 = jnp.asarray(x, dtype=jnp.float32)           # (B, n_atoms*3)
    xa = jnp.reshape(x2, (batch, n_atoms, 3))

    fixed = [int(z[0, 0]), int(z[1, 0]), int(z[2, 0])]
    cond = np.asarray(z[3:], dtype=np.int32)         # (n_cond, 4)

    # ------------------ adaptive layout: lane axis = widest of (atoms, batch)
    atoms_on_lanes = n_cond >= 128
    if atoms_on_lanes:
        m_pad = -(-n_cond // 128) * 128              # atoms on lanes
        unit, cap = 8, 1024                          # batch tile on sublanes
    else:
        m_pad = max(8, -(-n_cond // 8) * 8)          # atoms on sublanes
        unit, cap = 128, 2048                        # batch tile on lanes

    # (12 in + 4 out) f32 planes, double-buffered; keep under ~20 MiB per step
    per_row = 16 * m_pad * 4 * 2
    tb = _pick_batch_tile(batch, unit, cap, per_row, 20 * 1024 * 1024)
    b_pad = -(-batch // tb) * tb

    # Fused static gather indices: idx[p*3+c, j] = 3*cond[j, p] + c; padded
    # atom rows re-use the first conditioned atom (harmless, sliced off later).
    cond_pad = np.zeros((m_pad, 4), dtype=np.int32)
    if n_cond > 0:
        cond_pad[:n_cond] = cond
        cond_pad[n_cond:] = cond[0]
    idx = (3 * cond_pad.T[:, None, :]
           + np.arange(3, dtype=np.int32)[None, :, None]).reshape(12, m_pad)
    idx_flat = jnp.asarray(idx.reshape(-1), dtype=jnp.int32)

    # One pad of x, (at most) one transpose, ONE gather -> packed kernel input.
    x_p = jnp.pad(x2, ((0, b_pad - batch), (0, 0)))      # (b_pad, 3*n_atoms)
    if atoms_on_lanes:
        g = jnp.take(x_p, idx_flat, axis=1)              # (b_pad, 12*m_pad)
        pts = jnp.transpose(jnp.reshape(g, (b_pad, 12, m_pad)), (1, 0, 2))
        block_in = (12, tb, m_pad)
        block_out = (4, tb, m_pad)
        imap = lambda i: (0, i, 0)
    else:
        xT = jnp.transpose(x_p)                          # (3*n_atoms, b_pad)
        g = jnp.take(xT, idx_flat, axis=0)               # (12*m_pad, b_pad)
        pts = jnp.reshape(g, (12, m_pad, b_pad))
        block_in = (12, m_pad, tb)
        block_out = (4, m_pad, tb)
        imap = lambda i: (0, 0, i)

    grid = (b_pad // tb,)
    out = pl.pallas_call(
        _ic_kernel,
        out_shape=jax.ShapeDtypeStruct((4,) + pts.shape[1:], jnp.float32),
        grid=grid,
        in_specs=[pl.BlockSpec(block_in, imap)],
        out_specs=pl.BlockSpec(block_out, imap),
        compiler_params=pltpu.CompilerParams(
            dimension_semantics=("parallel",),
            vmem_limit_bytes=32 * 1024 * 1024),
        cost_estimate=pl.CostEstimate(
            flops=160 * b_pad * m_pad,
            transcendentals=6 * b_pad * m_pad,
            bytes_accessed=16 * b_pad * m_pad * 4),
    )(pts)

    if atoms_on_lanes:
        bonds_rel = out[0, :batch, :n_cond]
        angles_rel = out[1, :batch, :n_cond]
        dihedrals = out[2, :batch, :n_cond]
        ld_rel_sum = jnp.sum(out[3, :batch, :n_cond], axis=-1)
    else:
        bonds_rel = jnp.transpose(out[0, :n_cond, :batch])
        angles_rel = jnp.transpose(out[1, :n_cond, :batch])
        dihedrals = jnp.transpose(out[2, :n_cond, :batch])
        ld_rel_sum = jnp.sum(out[3, :n_cond, :batch], axis=0)

    # -------- reference frame from the three fixed atoms (plain JAX; tiny) ----
    xp = xa[:, fixed[0], :]
    xq = xa[:, fixed[1], :]
    xr = xa[:, fixed[2], :]
    v01 = xq - xp
    v12 = xr - xq
    d01 = jnp.sqrt(jnp.sum(v01 * v01, axis=-1))
    d12 = jnp.sqrt(jnp.sum(v12 * v12, axis=-1))
    cos012 = -jnp.sum(v01 * v12, axis=-1) / jnp.maximum(d01 * d12, _EPS)
    cos012 = jnp.clip(cos012, -1.0 + _EPS, 1.0 - _EPS)
    sin012 = jnp.sqrt(1.0 - cos012 * cos012)
    a012 = jnp.arccos(cos012)

    # orthonormal frame: e1 || (q-p), e3 || (q-p)x(r-q), e2 = e3 x e1
    e1 = v01 / jnp.maximum(d01, _EPS)[:, None]
    nrm = jnp.cross(v01, v12)
    e3 = nrm / jnp.maximum(jnp.sqrt(jnp.sum(nrm * nrm, axis=-1)), _EPS)[:, None]
    e2 = jnp.cross(e3, e1)

    # ZYZ Euler angles of the rotation matrix with columns (e1, e2, e3)
    cos_beta = jnp.clip(e3[:, 2], -1.0 + _EPS, 1.0 - _EPS)
    sin_beta = jnp.sqrt(1.0 - cos_beta * cos_beta)
    beta = jnp.arccos(cos_beta)
    alpha = jnp.arctan2(e3[:, 1], e3[:, 0])
    gamma = jnp.arctan2(e2[:, 2], -e1[:, 2])

    ld_frame = -(2.0 * jnp.log(jnp.maximum(d01, _EPS))
                 + 2.0 * jnp.log(jnp.maximum(d12, _EPS))
                 + jnp.log(sin012) + jnp.log(sin_beta))

    if NORMALIZE_ANGLES:
        a012 = a012 / _PI
        ld_norm = -(n_cond + 1) * float(np.log(_PI)) - n_cond * float(np.log(2.0 * _PI))
    else:
        ld_norm = 0.0

    log_det_J = ld_rel_sum + ld_frame + ld_norm                 # (B,)
    R = jnp.stack([alpha, beta, gamma], axis=1)                 # (B, 3)
    x0 = xa[:, fixed[0]:fixed[0] + 1, :]                        # (B, 1, 3)

    bonds = jnp.concatenate([d01[:, None], d12[:, None], bonds_rel], axis=1)
    angles = jnp.concatenate([a012[:, None], angles_rel], axis=1)

    # tfep packing: interleave [bond, angle, dihedral] per atom, prepend frame ICs.
    ics = jnp.stack([bonds[:, 2:], angles[:, 1:], dihedrals], axis=2)
    ics = jnp.reshape(ics, (batch, -1))
    ics = jnp.concatenate([bonds[:, :2], angles[:, :1], ics], axis=1)

    return ics, log_det_J, x0, R


if __name__ == "__main__":
    batch = 2
    n_atoms = 16

    # Simple chain z-matrix: atom i uses (i-1, i-2, i-3); first 3 rows set the frame.
    z_matrix = np.full((n_atoms, 4), -1, dtype=np.int64)
    for i in range(n_atoms):
        z_matrix[i, 0] = i
        if i >= 1:
            z_matrix[i, 1] = i - 1
        if i >= 2:
            z_matrix[i, 2] = i - 2
        if i >= 3:
            z_matrix[i, 3] = i - 3

    key = jax.random.PRNGKey(0)
    t = jnp.arange(n_atoms, dtype=jnp.float32) * 0.8
    base = jnp.stack([1.5 * jnp.cos(t), 1.5 * jnp.sin(t), 0.4 * t], axis=1)   # helix
    noise = 0.15 * jax.random.normal(key, (batch, n_atoms, 3), dtype=jnp.float32)
    xa_full = base[None] + noise
    x = jnp.reshape(xa_full, (batch, n_atoms * 3))

    fwd = jax.jit(lambda xx: cartesian_to_internal(xx, z_matrix))
    ics, log_det_J, x0, R = fwd(x)
    jax.block_until_ready((ics, log_det_J, x0, R))

    assert ics.shape == (batch, n_atoms * 3 - 6)
    assert log_det_J.shape == (batch,)
    assert x0.shape == (batch, 1, 3)
    assert R.shape == (batch, 3)
    assert bool(jnp.all(jnp.isfinite(ics)))
    assert bool(jnp.all(jnp.isfinite(log_det_J)))
    assert bool(jnp.all(jnp.isfinite(R)))

    # quick sanity check: first relative bond (atom 3 vs atom 2) against plain JAX
    ref_bond = jnp.sqrt(jnp.sum((xa_full[:, 3] - xa_full[:, 2]) ** 2, axis=-1))
    assert bool(jnp.all(jnp.abs(ics[:, 3] - ref_bond) < 1e-3))

    print("KERNEL_OK")
</pallas_src>

<mosaic_0001>
module attributes {stable_mosaic.version = 11 : i64} {
  func.func @_ic_kernel(%arg0: i32, %arg1: memref<12x16x128xf32, #tpu.memory_space<vmem>>, %arg2: memref<4x16x128xf32, #tpu.memory_space<vmem>>) attributes {dimension_semantics = [#tpu.dimension_semantics<parallel>], iteration_bounds = array<i64: 1>, scalar_prefetch = 0 : i64, scratch_operands = 0 : i64, tpu.core_type = #tpu.core_type<tc>, window_params = [{transform_indices = @transform_0, window_bounds = array<i64: 12, 16, 128>}, {transform_indices = @transform_1, window_bounds = array<i64: 4, 16, 128>}]} {
    %c0 = arith.constant 0 : index
    %c0_0 = arith.constant 0 : index
    %c0_1 = arith.constant 0 : index
    %0 = vector.load %arg1[%c0, %c0_0, %c0_1] : memref<12x16x128xf32, #tpu.memory_space<vmem>>, vector<1x16x128xf32>
    %1 = vector.shape_cast %0 : vector<1x16x128xf32> to vector<16x128xf32>
    %c1 = arith.constant 1 : index
    %c0_2 = arith.constant 0 : index
    %c0_3 = arith.constant 0 : index
    %2 = vector.load %arg1[%c1, %c0_2, %c0_3] : memref<12x16x128xf32, #tpu.memory_space<vmem>>, vector<1x16x128xf32>
    %3 = vector.shape_cast %2 : vector<1x16x128xf32> to vector<16x128xf32>
    %c2 = arith.constant 2 : index
    %c0_4 = arith.constant 0 : index
    %c0_5 = arith.constant 0 : index
    %4 = vector.load %arg1[%c2, %c0_4, %c0_5] : memref<12x16x128xf32, #tpu.memory_space<vmem>>, vector<1x16x128xf32>
    %5 = vector.shape_cast %4 : vector<1x16x128xf32> to vector<16x128xf32>
    %c3 = arith.constant 3 : index
    %c0_6 = arith.constant 0 : index
    %c0_7 = arith.constant 0 : index
    %6 = vector.load %arg1[%c3, %c0_6, %c0_7] : memref<12x16x128xf32, #tpu.memory_space<vmem>>, vector<1x16x128xf32>
    %7 = vector.shape_cast %6 : vector<1x16x128xf32> to vector<16x128xf32>
    %c4 = arith.constant 4 : index
    %c0_8 = arith.constant 0 : index
    %c0_9 = arith.constant 0 : index
    %8 = vector.load %arg1[%c4, %c0_8, %c0_9] : memref<12x16x128xf32, #tpu.memory_space<vmem>>, vector<1x16x128xf32>
    %9 = vector.shape_cast %8 : vector<1x16x128xf32> to vector<16x128xf32>
    %c5 = arith.constant 5 : index
    %c0_10 = arith.constant 0 : index
    %c0_11 = arith.constant 0 : index
    %10 = vector.load %arg1[%c5, %c0_10, %c0_11] : memref<12x16x128xf32, #tpu.memory_space<vmem>>, vector<1x16x128xf32>
    %11 = vector.shape_cast %10 : vector<1x16x128xf32> to vector<16x128xf32>
    %c6 = arith.constant 6 : index
    %c0_12 = arith.constant 0 : index
    %c0_13 = arith.constant 0 : index
    %12 = vector.load %arg1[%c6, %c0_12, %c0_13] : memref<12x16x128xf32, #tpu.memory_space<vmem>>, vector<1x16x128xf32>
    %13 = vector.shape_cast %12 : vector<1x16x128xf32> to vector<16x128xf32>
    %c7 = arith.constant 7 : index
    %c0_14 = arith.constant 0 : index
    %c0_15 = arith.constant 0 : index
    %14 = vector.load %arg1[%c7, %c0_14, %c0_15] : memref<12x16x128xf32, #tpu.memory_space<vmem>>, vector<1x16x128xf32>
    %15 = vector.shape_cast %14 : vector<1x16x128xf32> to vector<16x128xf32>
    %c8 = arith.constant 8 : index
    %c0_16 = arith.constant 0 : index
    %c0_17 = arith.constant 0 : index
    %16 = vector.load %arg1[%c8, %c0_16, %c0_17] : memref<12x16x128xf32, #tpu.memory_space<vmem>>, vector<1x16x128xf32>
    %17 = vector.shape_cast %16 : vector<1x16x128xf32> to vector<16x128xf32>
    %c9 = arith.constant 9 : index
    %c0_18 = arith.constant 0 : index
    %c0_19 = arith.constant 0 : index
    %18 = vector.load %arg1[%c9, %c0_18, %c0_19] : memref<12x16x128xf32, #tpu.memory_space<vmem>>, vector<1x16x128xf32>
    %19 = vector.shape_cast %18 : vector<1x16x128xf32> to vector<16x128xf32>
    %c10 = arith.constant 10 : index
    %c0_20 = arith.constant 0 : index
    %c0_21 = arith.constant 0 : index
    %20 = vector.load %arg1[%c10, %c0_20, %c0_21] : memref<12x16x128xf32, #tpu.memory_space<vmem>>, vector<1x16x128xf32>
    %21 = vector.shape_cast %20 : vector<1x16x128xf32> to vector<16x128xf32>
    %c11 = arith.constant 11 : index
    %c0_22 = arith.constant 0 : index
    %c0_23 = arith.constant 0 : index
    %22 = vector.load %arg1[%c11, %c0_22, %c0_23] : memref<12x16x128xf32, #tpu.memory_space<vmem>>, vector<1x16x128xf32>
    %23 = vector.shape_cast %22 : vector<1x16x128xf32> to vector<16x128xf32>
    %24 = arith.subf %1, %7 : vector<16x128xf32>
    %25 = arith.subf %3, %9 : vector<16x128xf32>
    %26 = arith.subf %5, %11 : vector<16x128xf32>
    %27 = arith.subf %13, %7 : vector<16x128xf32>
    %28 = arith.subf %15, %9 : vector<16x128xf32>
    %29 = arith.subf %17, %11 : vector<16x128xf32>
    %30 = arith.subf %19, %13 : vector<16x128xf32>
    %31 = arith.subf %21, %15 : vector<16x128xf32>
    %32 = arith.subf %23, %17 : vector<16x128xf32>
    %33 = arith.mulf %24, %24 : vector<16x128xf32>
    %34 = arith.mulf %25, %25 : vector<16x128xf32>
    %35 = arith.addf %33, %34 : vector<16x128xf32>
    %36 = arith.mulf %26, %26 : vector<16x128xf32>
    %37 = arith.addf %35, %36 : vector<16x128xf32>
    %38 = arith.mulf %27, %27 : vector<16x128xf32>
    %39 = arith.mulf %28, %28 : vector<16x128xf32>
    %40 = arith.addf %38, %39 : vector<16x128xf32>
    %41 = arith.mulf %29, %29 : vector<16x128xf32>
    %42 = arith.addf %40, %41 : vector<16x128xf32>
    %cst = arith.constant 1.000000e-07 : f32
    %43 = vector.broadcast %cst : f32 to vector<16x128xf32>
    %44 = arith.maximumf %37, %43 : vector<16x128xf32>
    %45 = math.rsqrt %44 : vector<16x128xf32>
    %cst_24 = arith.constant 1.000000e-07 : f32
    %46 = vector.broadcast %cst_24 : f32 to vector<16x128xf32>
    %47 = arith.maximumf %42, %46 : vector<16x128xf32>
    %48 = math.rsqrt %47 : vector<16x128xf32>
    %49 = arith.mulf %37, %45 : vector<16x128xf32>
    %c0_25 = arith.constant 0 : index
    %c0_26 = arith.constant 0 : index
    %c0_27 = arith.constant 0 : index
    %50 = vector.load %arg2[%c0_25, %c0_26, %c0_27] : memref<4x16x128xf32, #tpu.memory_space<vmem>>, vector<1x16x128xf32>
    %51 = vector.shape_cast %50 : vector<1x16x128xf32> to vector<16x128xf32>
    %52 = vector.shape_cast %49 : vector<16x128xf32> to vector<1x16x128xf32>
    tpu.vector_store %arg2[%c0_25, %c0_26, %c0_27], %52 {strides = array<i32>} : memref<4x16x128xf32, #tpu.memory_space<vmem>>, vector<1x16x128xf32>,
    %53 = arith.mulf %24, %27 : vector<16x128xf32>
    %54 = arith.mulf %25, %28 : vector<16x128xf32>
    %55 = arith.addf %53, %54 : vector<16x128xf32>
    %56 = arith.mulf %26, %29 : vector<16x128xf32>
    %57 = arith.addf %55, %56 : vector<16x128xf32>
    %58 = arith.mulf %45, %48 : vector<16x128xf32>
    %59 = arith.mulf %57, %58 : vector<16x128xf32>
    %cst_28 = arith.constant -0.99999988 : f32
    %cst_29 = arith.constant 0.99999988 : f32
    %60 = vector.broadcast %cst_28 : f32 to vector<16x128xf32>
    %61 = arith.maximumf %60, %59 : vector<16x128xf32>
    %62 = vector.broadcast %cst_29 : f32 to vector<16x128xf32>
    %63 = arith.minimumf %62, %61 : vector<16x128xf32>
    %64 = arith.mulf %63, %63 : vector<16x128xf32>
    %cst_30 = arith.constant 1.000000e+00 : f32
    %65 = vector.broadcast %cst_30 : f32 to vector<16x128xf32>
    %66 = arith.subf %65, %64 : vector<16x128xf32>
    %67 = math.sqrt %66 : vector<16x128xf32>
    %68 = math.absf %67 : vector<16x128xf32>
    %69 = math.absf %63 : vector<16x128xf32>
    %cst_31 = arith.constant 2.41421366 : f32
    %70 = vector.broadcast %cst_31 : f32 to vector<16x128xf32>
    %71 = arith.mulf %70, %69 : vector<16x128xf32>
    %72 = arith.cmpf ogt, %68, %71 : vector<16x128xf32>
    %cst_32 = arith.constant 0.414213568 : f32
    %73 = vector.broadcast %cst_32 : f32 to vector<16x128xf32>
    %74 = arith.mulf %73, %69 : vector<16x128xf32>
    %75 = arith.cmpf ogt, %68, %74 : vector<16x128xf32>
    %cst_33 = arith.constant 0.000000e+00 : f32
    %76 = vector.broadcast %cst_33 : f32 to vector<16x128xf32>
    %77 = arith.subf %76, %69 : vector<16x128xf32>
    %78 = arith.subf %68, %69 : vector<16x128xf32>
    %79 = arith.select %75, %78, %68 : vector<16x128xi1>, vector<16x128xf32>
    %80 = arith.select %72, %77, %79 : vector<16x128xi1>, vector<16x128xf32>
    %81 = arith.addf %68, %69 : vector<16x128xf32>
    %82 = arith.select %75, %81, %69 : vector<16x128xi1>, vector<16x128xf32>
    %83 = arith.select %72, %68, %82 : vector<16x128xi1>, vector<16x128xf32>
    %cst_34 = arith.constant 1.000000e-30 : f32
    %84 = vector.broadcast %cst_34 : f32 to vector<16x128xf32>
    %85 = arith.maximumf %83, %84 : vector<16x128xf32>
    %86 = tpu.reciprocal %85 {approx = true} : vector<16x128xf32> -> vector<16x128xf32>
    %87 = arith.mulf %85, %86 : vector<16x128xf32>
    %cst_35 = arith.constant 2.000000e+00 : f32
    %88 = vector.broadcast %cst_35 : f32 to vector<16x128xf32>
    %89 = arith.subf %88, %87 : vector<16x128xf32>
    %90 = arith.mulf %86, %89 : vector<16x128xf32>
    %91 = arith.mulf %80, %90 : vector<16x128xf32>
    %92 = arith.mulf %91, %91 : vector<16x128xf32>
    %cst_36 = arith.constant 0.0805374458 : f32
    %93 = vector.broadcast %cst_36 : f32 to vector<16x128xf32>
    %94 = arith.mulf %93, %92 : vector<16x128xf32>
    %cst_37 = arith.constant 0.138776854 : f32
    %95 = vector.broadcast %cst_37 : f32 to vector<16x128xf32>
    %96 = arith.subf %94, %95 : vector<16x128xf32>
    %97 = arith.mulf %96, %92 : vector<16x128xf32>
    %cst_38 = arith.constant 0.199777111 : f32
    %98 = vector.broadcast %cst_38 : f32 to vector<16x128xf32>
    %99 = arith.addf %97, %98 : vector<16x128xf32>
    %100 = arith.mulf %99, %92 : vector<16x128xf32>
    %cst_39 = arith.constant 0.333329499 : f32
    %101 = vector.broadcast %cst_39 : f32 to vector<16x128xf32>
    %102 = arith.subf %100, %101 : vector<16x128xf32>
    %103 = arith.mulf %102, %92 : vector<16x128xf32>
    %104 = arith.mulf %103, %91 : vector<16x128xf32>
    %105 = arith.addf %104, %91 : vector<16x128xf32>
    %cst_40 = arith.constant 0.785398185 : f32
    %cst_41 = arith.constant 0.000000e+00 : f32
    %106 = vector.broadcast %cst_40 : f32 to vector<16x128xf32>
    %107 = vector.broadcast %cst_41 : f32 to vector<16x128xf32>
    %108 = arith.select %75, %106, %107 : vector<16x128xi1>, vector<16x128xf32>
    %cst_42 = arith.constant 1.57079637 : f32
    %109 = vector.broadcast %cst_42 : f32 to vector<16x128xf32>
    %110 = arith.select %72, %109, %108 : vector<16x128xi1>, vector<16x128xf32>
    %111 = arith.addf %110, %105 : vector<16x128xf32>
    %cst_43 = arith.constant 0.000000e+00 : f32
    %112 = vector.broadcast %cst_43 : f32 to vector<16x128xf32>
    %113 = arith.cmpf olt, %63, %112 : vector<16x128xf32>
    %cst_44 = arith.constant 3.14159274 : f32
    %114 = vector.broadcast %cst_44 : f32 to vector<16x128xf32>
    %115 = arith.subf %114, %111 : vector<16x128xf32>
    %116 = arith.select %113, %115, %111 : vector<16x128xi1>, vector<16x128xf32>
    %cst_45 = arith.constant 0.000000e+00 : f32
    %117 = vector.broadcast %cst_45 : f32 to vector<16x128xf32>
    %118 = arith.cmpf olt, %67, %117 : vector<16x128xf32>
    %cst_46 = arith.constant 0.000000e+00 : f32
    %119 = vector.broadcast %cst_46 : f32 to vector<16x128xf32>
    %120 = arith.subf %119, %116 : vector<16x128xf32>
    %121 = arith.select %118, %120, %116 : vector<16x128xi1>, vector<16x128xf32>
    %cst_47 = arith.constant 0.318309873 : f32
    %122 = vector.broadcast %cst_47 : f32 to vector<16x128xf32>
    %123 = arith.mulf %121, %122 : vector<16x128xf32>
    %c1_48 = arith.constant 1 : index
    %c0_49 = arith.constant 0 : index
    %c0_50 = arith.constant 0 : index
    %124 = vector.load %arg2[%c1_48, %c0_49, %c0_50] : memref<4x16x128xf32, #tpu.memory_space<vmem>>, vector<1x16x128xf32>
    %125 = vector.shape_cast %124 : vector<1x16x128xf32> to vector<16x128xf32>
    %126 = vector.shape_cast %123 : vector<16x128xf32> to vector<1x16x128xf32>
    tpu.vector_store %arg2[%c1_48, %c0_49, %c0_50], %126 {strides = array<i32>} : memref<4x16x128xf32, #tpu.memory_space<vmem>>, vector<1x16x128xf32>,
    %127 = arith.mulf %27, %48 : vector<16x128xf32>
    %128 = arith.mulf %28, %48 : vector<16x128xf32>
    %129 = arith.mulf %29, %48 : vector<16x128xf32>
    %130 = arith.mulf %24, %127 : vector<16x128xf32>
    %131 = arith.mulf %25, %128 : vector<16x128xf32>
    %132 = arith.addf %130, %131 : vector<16x128xf32>
    %133 = arith.mulf %26, %129 : vector<16x128xf32>
    %134 = arith.addf %132, %133 : vector<16x128xf32>
    %135 = arith.mulf %127, %134 : vector<16x128xf32>
    %136 = arith.mulf %128, %134 : vector<16x128xf32>
    %137 = arith.mulf %129, %134 : vector<16x128xf32>
    %138 = arith.subf %24, %135 : vector<16x128xf32>
    %139 = arith.subf %25, %136 : vector<16x128xf32>
    %140 = arith.subf %26, %137 : vector<16x128xf32>
    %141 = arith.mulf %30, %127 : vector<16x128xf32>
    %142 = arith.mulf %31, %128 : vector<16x128xf32>
    %143 = arith.addf %141, %142 : vector<16x128xf32>
    %144 = arith.mulf %32, %129 : vector<16x128xf32>
    %145 = arith.addf %143, %144 : vector<16x128xf32>
    %146 = arith.mulf %127, %145 : vector<16x128xf32>
    %147 = arith.mulf %128, %145 : vector<16x128xf32>
    %148 = arith.mulf %129, %145 : vector<16x128xf32>
    %149 = arith.subf %30, %146 : vector<16x128xf32>
    %150 = arith.subf %31, %147 : vector<16x128xf32>
    %151 = arith.subf %32, %148 : vector<16x128xf32>
    %152 = arith.mulf %138, %149 : vector<16x128xf32>
    %153 = arith.mulf %139, %150 : vector<16x128xf32>
    %154 = arith.addf %152, %153 : vector<16x128xf32>
    %155 = arith.mulf %140, %151 : vector<16x128xf32>
    %156 = arith.addf %154, %155 : vector<16x128xf32>
    %157 = arith.mulf %128, %140 : vector<16x128xf32>
    %158 = arith.mulf %129, %139 : vector<16x128xf32>
    %159 = arith.subf %157, %158 : vector<16x128xf32>
    %160 = arith.mulf %129, %138 : vector<16x128xf32>
    %161 = arith.mulf %127, %140 : vector<16x128xf32>
    %162 = arith.subf %160, %161 : vector<16x128xf32>
    %163 = arith.mulf %127, %139 : vector<16x128xf32>
    %164 = arith.mulf %128, %138 : vector<16x128xf32>
    %165 = arith.subf %163, %164 : vector<16x128xf32>
    %166 = arith.mulf %159, %149 : vector<16x128xf32>
    %167 = arith.mulf %162, %150 : vector<16x128xf32>
    %168 = arith.addf %166, %167 : vector<16x128xf32>
    %169 = arith.mulf %165, %151 : vector<16x128xf32>
    %170 = arith.addf %168, %169 : vector<16x128xf32>
    %171 = math.absf %170 : vector<16x128xf32>
    %172 = math.absf %156 : vector<16x128xf32>
    %cst_51 = arith.constant 2.41421366 : f32
    %173 = vector.broadcast %cst_51 : f32 to vector<16x128xf32>
    %174 = arith.mulf %173, %172 : vector<16x128xf32>
    %175 = arith.cmpf ogt, %171, %174 : vector<16x128xf32>
    %cst_52 = arith.constant 0.414213568 : f32
    %176 = vector.broadcast %cst_52 : f32 to vector<16x128xf32>
    %177 = arith.mulf %176, %172 : vector<16x128xf32>
    %178 = arith.cmpf ogt, %171, %177 : vector<16x128xf32>
    %cst_53 = arith.constant 0.000000e+00 : f32
    %179 = vector.broadcast %cst_53 : f32 to vector<16x128xf32>
    %180 = arith.subf %179, %172 : vector<16x128xf32>
    %181 = arith.subf %171, %172 : vector<16x128xf32>
    %182 = arith.select %178, %181, %171 : vector<16x128xi1>, vector<16x128xf32>
    %183 = arith.select %175, %180, %182 : vector<16x128xi1>, vector<16x128xf32>
    %184 = arith.addf %171, %172 : vector<16x128xf32>
    %185 = arith.select %178, %184, %172 : vector<16x128xi1>, vector<16x128xf32>
    %186 = arith.select %175, %171, %185 : vector<16x128xi1>, vector<16x128xf32>
    %cst_54 = arith.constant 1.000000e-30 : f32
    %187 = vector.broadcast %cst_54 : f32 to vector<16x128xf32>
    %188 = arith.maximumf %186, %187 : vector<16x128xf32>
    %189 = tpu.reciprocal %188 {approx = true} : vector<16x128xf32> -> vector<16x128xf32>
    %190 = arith.mulf %188, %189 : vector<16x128xf32>
    %cst_55 = arith.constant 2.000000e+00 : f32
    %191 = vector.broadcast %cst_55 : f32 to vector<16x128xf32>
    %192 = arith.subf %191, %190 : vector<16x128xf32>
    %193 = arith.mulf %189, %192 : vector<16x128xf32>
    %194 = arith.mulf %183, %193 : vector<16x128xf32>
    %195 = arith.mulf %194, %194 : vector<16x128xf32>
    %cst_56 = arith.constant 0.0805374458 : f32
    %196 = vector.broadcast %cst_56 : f32 to vector<16x128xf32>
    %197 = arith.mulf %196, %195 : vector<16x128xf32>
    %cst_57 = arith.constant 0.138776854 : f32
    %198 = vector.broadcast %cst_57 : f32 to vector<16x128xf32>
    %199 = arith.subf %197, %198 : vector<16x128xf32>
    %200 = arith.mulf %199, %195 : vector<16x128xf32>
    %cst_58 = arith.constant 0.199777111 : f32
    %201 = vector.broadcast %cst_58 : f32 to vector<16x128xf32>
    %202 = arith.addf %200, %201 : vector<16x128xf32>
    %203 = arith.mulf %202, %195 : vector<16x128xf32>
    %cst_59 = arith.constant 0.333329499 : f32
    %204 = vector.broadcast %cst_59 : f32 to vector<16x128xf32>
    %205 = arith.subf %203, %204 : vector<16x128xf32>
    %206 = arith.mulf %205, %195 : vector<16x128xf32>
    %207 = arith.mulf %206, %194 : vector<16x128xf32>
    %208 = arith.addf %207, %194 : vector<16x128xf32>
    %cst_60 = arith.constant 0.785398185 : f32
    %cst_61 = arith.constant 0.000000e+00 : f32
    %209 = vector.broadcast %cst_60 : f32 to vector<16x128xf32>
    %210 = vector.broadcast %cst_61 : f32 to vector<16x128xf32>
    %211 = arith.select %178, %209, %210 : vector<16x128xi1>, vector<16x128xf32>
    %cst_62 = arith.constant 1.57079637 : f32
    %212 = vector.broadcast %cst_62 : f32 to vector<16x128xf32>
    %213 = arith.select %175, %212, %211 : vector<16x128xi1>, vector<16x128xf32>
    %214 = arith.addf %213, %208 : vector<16x128xf32>
    %cst_63 = arith.constant 0.000000e+00 : f32
    %215 = vector.broadcast %cst_63 : f32 to vector<16x128xf32>
    %216 = arith.cmpf olt, %156, %215 : vector<16x128xf32>
    %cst_64 = arith.constant 3.14159274 : f32
    %217 = vector.broadcast %cst_64 : f32 to vector<16x128xf32>
    %218 = arith.subf %217, %214 : vector<16x128xf32>
    %219 = arith.select %216, %218, %214 : vector<16x128xi1>, vector<16x128xf32>
    %cst_65 = arith.constant 0.000000e+00 : f32
    %220 = vector.broadcast %cst_65 : f32 to vector<16x128xf32>
    %221 = arith.cmpf olt, %170, %220 : vector<16x128xf32>
    %cst_66 = arith.constant 0.000000e+00 : f32
    %222 = vector.broadcast %cst_66 : f32 to vector<16x128xf32>
    %223 = arith.subf %222, %219 : vector<16x128xf32>
    %224 = arith.select %221, %223, %219 : vector<16x128xi1>, vector<16x128xf32>
    %cst_67 = arith.constant 3.14159274 : f32
    %225 = vector.broadcast %cst_67 : f32 to vector<16x128xf32>
    %226 = arith.addf %224, %225 : vector<16x128xf32>
    %cst_68 = arith.constant 0.159154937 : f32
    %227 = vector.broadcast %cst_68 : f32 to vector<16x128xf32>
    %228 = arith.mulf %226, %227 : vector<16x128xf32>
    %c2_69 = arith.constant 2 : index
    %c0_70 = arith.constant 0 : index
    %c0_71 = arith.constant 0 : index
    %229 = vector.load %arg2[%c2_69, %c0_70, %c0_71] : memref<4x16x128xf32, #tpu.memory_space<vmem>>, vector<1x16x128xf32>
    %230 = vector.shape_cast %229 : vector<1x16x128xf32> to vector<16x128xf32>
    %231 = vector.shape_cast %228 : vector<16x128xf32> to vector<1x16x128xf32>
    tpu.vector_store %arg2[%c2_69, %c0_70, %c0_71], %231 {strides = array<i32>} : memref<4x16x128xf32, #tpu.memory_space<vmem>>, vector<1x16x128xf32>,
    %232 = arith.mulf %37, %67 : vector<16x128xf32>
    %cst_72 = arith.constant 1.000000e-07 : f32
    %233 = vector.broadcast %cst_72 : f32 to vector<16x128xf32>
    %234 = arith.maximumf %232, %233 : vector<16x128xf32>
    %235 = math.log %234 : vector<16x128xf32>
    %cst_73 = arith.constant 0.000000e+00 : f32
    %236 = vector.broadcast %cst_73 : f32 to vector<16x128xf32>
    %237 = arith.subf %236, %235 : vector<16x128xf32>
    %c3_74 = arith.constant 3 : index
    %c0_75 = arith.constant 0 : index
    %c0_76 = arith.constant 0 : index
    %238 = vector.load %arg2[%c3_74, %c0_75, %c0_76] : memref<4x16x128xf32, #tpu.memory_space<vmem>>, vector<1x16x128xf32>
    %239 = vector.shape_cast %238 : vector<1x16x128xf32> to vector<16x128xf32>
    %240 = vector.shape_cast %237 : vector<16x128xf32> to vector<1x16x128xf32>
    tpu.vector_store %arg2[%c3_74, %c0_75, %c0_76], %240 {strides = array<i32>} : memref<4x16x128xf32, #tpu.memory_space<vmem>>, vector<1x16x128xf32>,
    return
  }
  func.func @transform_0(%arg0: i32) -> (i32, i32, i32) {
    %c0_i32 = arith.constant 0 : i32
    %c0_i32_0 = arith.constant 0 : i32
    %c0_i32_1 = arith.constant 0 : i32
    return %c0_i32, %c0_i32_0, %arg0 : i32, i32, i32
  }
  func.func @transform_1(%arg0: i32) -> (i32, i32, i32) {
    %c0_i32 = arith.constant 0 : i32
    %c0_i32_0 = arith.constant 0 : i32
    %c0_i32_1 = arith.constant 0 : i32
    return %c0_i32, %c0_i32_0, %arg0 : i32, i32, i32
  }
}

</mosaic_0001>

<llo_original>
// kernel: _lambda_.1
$region0: #{_lambda_.1}
  #allocation0 [shape = 'u32[]', space=smem, size = 0x4, offset = 0x4, fixed_abs, tag = 'smem constant byte address 0x4 - core index']
  #allocation1 [shape = 'u32[144,128]{1,0:T(1,128)}', space=vmem, size = 0x12000, scoped, tag = 'internal scratch']
  %s0 = inlined_call_operand.vmem [shape: f32[12,16,128], index: 0, kind: input, shape index: {}]
  %s1 = inlined_call_operand.vmem [shape: f32[4,16,128], index: 1, kind: output, shape index: {}]
  %s2 = sld [smem:[#allocation0]]
  $region14: #{_lambda_.1} parent=0
    _
  %s4 = ssub.s32 1, %s2
  %s5 = scalar_select 0, %s4, %s2
  // Predicated region
  $region2: #{_lambda_.1} parent=0 // pred_check
    _
  $region3: #{_lambda_.1} parent=0 // pred_check_branch
    %7 = sbr.rel (0) target = $region5
  $region4: #{_lambda_.1} parent=0 // pred_region
    _
  $region5: #{_lambda_.1} parent=0 // pred_fallthru
    _
  %v8 = vld [vmem:[%s0] sm:$0xff]
  %v9 = vld [vmem:[%s0 + $0x8] sm:$0xff]
  %s10 = scalar_lea.vmem %s0, 16
  %v11 = vld [vmem:[%s10] sm:$0xff]
  %v12 = vld [vmem:[%s10 + $0x8] sm:$0xff]
  %s13 = scalar_lea.vmem %s0, 32
  %v14 = vld [vmem:[%s13] sm:$0xff]
  %v15 = vld [vmem:[%s13 + $0x8] sm:$0xff]
  %s16 = scalar_lea.vmem %s0, 48
  %v17 = vld [vmem:[%s16] sm:$0xff]
  %v18 = vld [vmem:[%s16 + $0x8] sm:$0xff]
  %s19 = scalar_lea.vmem %s0, 64
  %v20 = vld [vmem:[%s19] sm:$0xff]
  %v21 = vld [vmem:[%s19 + $0x8] sm:$0xff]
  %s22 = scalar_lea.vmem %s0, 80
  %v23 = vld [vmem:[%s22] sm:$0xff]
  %v24 = vld [vmem:[%s22 + $0x8] sm:$0xff]
  %s25 = scalar_lea.vmem %s0, 96
  %v26 = vld [vmem:[%s25] sm:$0xff]
  %v27 = vld [vmem:[%s25 + $0x8] sm:$0xff]
  %s28 = scalar_lea.vmem %s0, 112
  %v29 = vld [vmem:[%s28] sm:$0xff]
  %v30 = vld [vmem:[%s28 + $0x8] sm:$0xff]
  %s31 = scalar_lea.vmem %s0, 128
  %v32 = vld [vmem:[%s31] sm:$0xff]
  %v33 = vld [vmem:[%s31 + $0x8] sm:$0xff]
  %s34 = scalar_lea.vmem %s0, 144
  %v35 = vld [vmem:[%s34] sm:$0xff]
  %v36 = vld [vmem:[%s34 + $0x8] sm:$0xff]
  %s37 = scalar_lea.vmem %s0, 160
  %v38 = vld [vmem:[%s37] sm:$0xff]
  %v39 = vld [vmem:[%s37 + $0x8] sm:$0xff]
  %s40 = scalar_lea.vmem %s0, 176
  %v41 = vld [vmem:[%s40] sm:$0xff]
  %v42 = vld [vmem:[%s40 + $0x8] sm:$0xff]
  %v43 = vsub.f32 %v8, %v17
  %v44 = vsub.f32 %v9, %v18
  %v45 = vsub.f32 %v11, %v20
  %v46 = vsub.f32 %v12, %v21
  %v47 = vsub.f32 %v14, %v23
  %v48 = vsub.f32 %v15, %v24
  %v49 = vsub.f32 %v26, %v17
  %v50 = vsub.f32 %v27, %v18
  %v51 = vsub.f32 %v29, %v20
  %v52 = vsub.f32 %v30, %v21
  %v53 = vsub.f32 %v32, %v23
  %v54 = vsub.f32 %v33, %v24
  %v55 = vsub.f32 %v35, %v26
  %v56 = vsub.f32 %v36, %v27
  %v57 = vsub.f32 %v38, %v29
  %v58 = vsub.f32 %v39, %v30
  %v59 = vsub.f32 %v41, %v32
  %v60 = vsub.f32 %v42, %v33
  %v61 = vmul.f32 %v43, %v43
  %v62 = vmul.f32 %v44, %v44
  %v63 = vmul.f32 %v45, %v45
  %v64 = vmul.f32 %v46, %v46
  %v65 = vadd.f32 %v61, %v63
  %v66 = vadd.f32 %v62, %v64
  %v67 = vmul.f32 %v47, %v47
  %v68 = vmul.f32 %v48, %v48
  %v69 = vadd.f32 %v65, %v67
  %v70 = vadd.f32 %v66, %v68
  %v71 = vmul.f32 %v49, %v49
  %v72 = vmul.f32 %v50, %v50
  %v73 = vmul.f32 %v51, %v51
  %v74 = vmul.f32 %v52, %v52
  %v75 = vadd.f32 %v71, %v73
  %v76 = vadd.f32 %v72, %v74
  %v77 = vmul.f32 %v53, %v53
  %v78 = vmul.f32 %v54, %v54
  %v79 = vadd.f32 %v75, %v77
  %v80 = vadd.f32 %v76, %v78
  %v81 = vmax.f32 %v69, 1e-07
  %v82 = vmax.f32 %v70, 1e-07
  %v83 = vrsqrt.pop %v81
  %v84 = vrsqrt.pop %v82
  %v85 = vmax.f32 %v79, 1e-07
  %v86 = vmax.f32 %v80, 1e-07
  %v87 = vrsqrt.pop %v85
  %v88 = vrsqrt.pop %v86
  %v89 = vmul.f32 %v69, %v83
  %v90 = vmul.f32 %v70, %v84
  %91 = vst [vmem:[%s1] sm:$0xff] %v89
  %92 = vst [vmem:[%s1 + $0x8] sm:$0xff] %v90
  %v93 = vmul.f32 %v43, %v49
  %v94 = vmul.f32 %v44, %v50
  %v95 = vmul.f32 %v45, %v51
  %v96 = vmul.f32 %v46, %v52
  %v97 = vadd.f32 %v93, %v95
  %v98 = vadd.f32 %v94, %v96
  %v99 = vmul.f32 %v47, %v53
  %v100 = vmul.f32 %v48, %v54
  %v101 = vadd.f32 %v97, %v99
  %v102 = vadd.f32 %v98, %v100
  %v103 = vmul.f32 %v83, %v87
  %v104 = vmul.f32 %v84, %v88
  %v105 = vmul.f32 %v101, %v103
  %v106 = vmul.f32 %v102, %v104
  %v107 = vmax.f32 %v105, -0.9999999
  %v108 = vmax.f32 %v106, -0.9999999
  %v109 = vmin.f32 %v107, 0.9999999
  %v110 = vmin.f32 %v108, 0.9999999
  %v111 = vmul.f32 %v109, %v109
  %v112 = vmul.f32 %v110, %v110
  %v113 = vsub.f32 1.0, %v111
  %v114 = vsub.f32 1.0, %v112
  %v115 = vrsqrt.pop %v113
  %v116 = vmul.f32 %v113, %v115
  %vm117 = vcmp.eq.f32.partialorder %v113, inf
  %v118 = vsel %vm117, %v113, %v116
  %vm119 = vcmp.eq.f32.partialorder %v113, 0.0
  %v120 = vand.u32 %v113, 2147483648
  %v121 = vsel %vm119, %v120, %v118
  %v122 = vrsqrt.pop %v114
  %v123 = vmul.f32 %v114, %v122
  %vm124 = vcmp.eq.f32.partialorder %v114, inf
  %v125 = vsel %vm124, %v114, %v123
  %vm126 = vcmp.eq.f32.partialorder %v114, 0.0
  %v127 = vand.u32 %v114, 2147483648
  %v128 = vsel %vm126, %v127, %v125
  %v129 = vand.u32 2147483647, %v121
  %v130 = vand.u32 2147483647, %v128
  %v131 = vand.u32 2147483647, %v109
  %v132 = vand.u32 2147483647, %v110
  %v133 = vmul.f32 %v131, 2.4142137
  %v134 = vmul.f32 %v132, 2.4142137
  %vm135 = vcmp.gt.f32.partialorder %v129, %v133
  %vm136 = vcmp.gt.f32.partialorder %v130, %v134
  %v137 = vmul.f32 %v131, 0.41421357
  %v138 = vmul.f32 %v132, 0.41421357
  %vm139 = vcmp.gt.f32.partialorder %v129, %v137
  %vm140 = vcmp.gt.f32.partialorder %v130, %v138
  %v141 = vsub.f32 0.0, %v131
  %v142 = vsub.f32 0.0, %v132
  %v143 = vsub.f32 %v129, %v131
  %v144 = vsub.f32 %v130, %v132
  %v145 = vsel %vm139, %v143, %v129
  %v146 = vsel %vm140, %v144, %v130
  %v147 = vsel %vm135, %v141, %v145
  %v148 = vsel %vm136, %v142, %v146
  %v149 = vadd.f32 %v129, %v131
  %v150 = vadd.f32 %v130, %v132
  %v151 = vsel %vm139, %v149, %v131
  %v152 = vsel %vm140, %v150, %v132
  %v153 = vsel %vm135, %v129, %v151
  %v154 = vsel %vm136, %v130, %v152
  %v155 = vmax.f32 %v153, 1e-30
  %v156 = vmax.f32 %v154, 1e-30
  %v157 = vrcp.pop %v155
  %v158 = vrcp.pop %v156
  %v159 = vmul.f32 %v155, %v157
  %v160 = vmul.f32 %v156, %v158
  %v161 = vsub.f32 2.0, %v159
  %v162 = vsub.f32 2.0, %v160
  %v163 = vmul.f32 %v157, %v161
  %v164 = vmul.f32 %v158, %v162
  %v165 = vmul.f32 %v147, %v163
  %v166 = vmul.f32 %v148, %v164
  %v167 = vmul.f32 %v165, %v165
  %v168 = vmul.f32 %v166, %v166
  %v169 = vmul.f32 %v167, 0.080537446
  %v170 = vmul.f32 %v168, 0.080537446
  %v171 = vsub.f32 %v169, 0.13877685
  %v172 = vsub.f32 %v170, 0.13877685
  %v173 = vmul.f32 %v171, %v167
  %v174 = vmul.f32 %v172, %v168
  %v175 = vadd.f32 %v173, 0.19977711
  %v176 = vadd.f32 %v174, 0.19977711
  %v177 = vmul.f32 %v175, %v167
  %v178 = vmul.f32 %v176, %v168
  %v179 = vsub.f32 %v177, 0.3333295
  %v180 = vsub.f32 %v178, 0.3333295
  %v181 = vmul.f32 %v179, %v167
  %v182 = vmul.f32 %v180, %v168
  %v183 = vmul.f32 %v181, %v165
  %v184 = vmul.f32 %v182, %v166
  %v185 = vadd.f32 %v183, %v165
  %v186 = vadd.f32 %v184, %v166
  %v187 = vsel %vm139, 0.7853982, 0.0
  %v188 = vsel %vm140, 0.7853982, 0.0
  %v189 = vsel %vm135, 1.5707964, %v187
  %v190 = vsel %vm136, 1.5707964, %v188
  %v191 = vadd.f32 %v189, %v185
  %v192 = vadd.f32 %v190, %v186
  %vm193 = vcmp.lt.f32.partialorder %v109, 0.0
  %vm194 = vcmp.lt.f32.partialorder %v110, 0.0
  %v195 = vsub.f32 3.1415927, %v191
  %v196 = vsub.f32 3.1415927, %v192
  %v197 = vsel %vm193, %v195, %v191
  %v198 = vsel %vm194, %v196, %v192
  %vm199 = vcmp.lt.f32.partialorder %v121, 0.0
  %vm200 = vcmp.lt.f32.partialorder %v128, 0.0
  %v201 = vsub.f32 0.0, %v197
  %v202 = vsub.f32 0.0, %v198
  %v203 = vsel %vm199, %v201, %v197
  %v204 = vsel %vm200, %v202, %v198
  %v205 = vmul.f32 %v203, 0.31830987
  %v206 = vmul.f32 %v204, 0.31830987
  %s207 = scalar_lea.vmem %s1, 16
  %208 = vst [vmem:[%s207] sm:$0xff] %v205
  %209 = vst [vmem:[%s207 + $0x8] sm:$0xff] %v206
  %v210 = vmul.f32 %v49, %v87
  %v211 = vmul.f32 %v50, %v88
  %v212 = vmul.f32 %v51, %v87
  %v213 = vmul.f32 %v52, %v88
  %v214 = vmul.f32 %v53, %v87
  %v215 = vmul.f32 %v54, %v88
  %v216 = vmul.f32 %v43, %v210
  %v217 = vmul.f32 %v44, %v211
  %v218 = vmul.f32 %v45, %v212
  %v219 = vmul.f32 %v46, %v213
  %v220 = vadd.f32 %v216, %v218
  %v221 = vadd.f32 %v217, %v219
  %v222 = vmul.f32 %v47, %v214
  %v223 = vmul.f32 %v48, %v215
  %v224 = vadd.f32 %v220, %v222
  %v225 = vadd.f32 %v221, %v223
  %v226 = vmul.f32 %v210, %v224
  %v227 = vmul.f32 %v211, %v225
  %v228 = vmul.f32 %v212, %v224
  %v229 = vmul.f32 %v213, %v225
  %v230 = vmul.f32 %v214, %v224
  %v231 = vmul.f32 %v215, %v225
  %v232 = vsub.f32 %v43, %v226
  %v233 = vsub.f32 %v44, %v227
  %v234 = vsub.f32 %v45, %v228
  %v235 = vsub.f32 %v46, %v229
  %v236 = vsub.f32 %v47, %v230
  %v237 = vsub.f32 %v48, %v231
  %v238 = vmul.f32 %v55, %v210
  %v239 = vmul.f32 %v56, %v211
  %v240 = vmul.f32 %v57, %v212
  %v241 = vmul.f32 %v58, %v213
  %v242 = vadd.f32 %v238, %v240
  %v243 = vadd.f32 %v239, %v241
  %v244 = vmul.f32 %v59, %v214
  %v245 = vmul.f32 %v60, %v215
  %v246 = vadd.f32 %v242, %v244
  %v247 = vadd.f32 %v243, %v245
  %v248 = vmul.f32 %v210, %v246
  %v249 = vmul.f32 %v211, %v247
  %v250 = vmul.f32 %v212, %v246
  %v251 = vmul.f32 %v213, %v247
  %v252 = vmul.f32 %v214, %v246
  %v253 = vmul.f32 %v215, %v247
  %v254 = vsub.f32 %v55, %v248
  %v255 = vsub.f32 %v56, %v249
  %v256 = vsub.f32 %v57, %v250
  %v257 = vsub.f32 %v58, %v251
  %v258 = vsub.f32 %v59, %v252
  %v259 = vsub.f32 %v60, %v253
  %v260 = vmul.f32 %v232, %v254
  %v261 = vmul.f32 %v233, %v255
  %v262 = vmul.f32 %v234, %v256
  %v263 = vmul.f32 %v235, %v257
  %v264 = vadd.f32 %v260, %v262
  %v265 = vadd.f32 %v261, %v263
  %v266 = vmul.f32 %v236, %v258
  %v267 = vmul.f32 %v237, %v259
  %v268 = vadd.f32 %v264, %v266
  %v269 = vadd.f32 %v265, %v267
  %v270 = vmul.f32 %v212, %v236
  %v271 = vmul.f32 %v213, %v237
  %v272 = vmul.f32 %v214, %v234
  %v273 = vmul.f32 %v215, %v235
  %v274 = vsub.f32 %v270, %v272
  %v275 = vsub.f32 %v271, %v273
  %v276 = vmul.f32 %v214, %v232
  %v277 = vmul.f32 %v215, %v233
  %v278 = vmul.f32 %v210, %v236
  %v279 = vmul.f32 %v211, %v237
  %v280 = vsub.f32 %v276, %v278
  %v281 = vsub.f32 %v277, %v279
  %v282 = vmul.f32 %v210, %v234
  %v283 = vmul.f32 %v211, %v235
  %v284 = vmul.f32 %v212, %v232
  %v285 = vmul.f32 %v213, %v233
  %v286 = vsub.f32 %v282, %v284
  %v287 = vsub.f32 %v283, %v285
  %v288 = vmul.f32 %v274, %v254
  %v289 = vmul.f32 %v275, %v255
  %v290 = vmul.f32 %v280, %v256
  %v291 = vmul.f32 %v281, %v257
  %v292 = vadd.f32 %v288, %v290
  %v293 = vadd.f32 %v289, %v291
  %v294 = vmul.f32 %v286, %v258
  %v295 = vmul.f32 %v287, %v259
  %v296 = vadd.f32 %v292, %v294
  %v297 = vadd.f32 %v293, %v295
  %v298 = vand.u32 2147483647, %v296
  %v299 = vand.u32 2147483647, %v297
  %v300 = vand.u32 2147483647, %v268
  %v301 = vand.u32 2147483647, %v269
  %v302 = vmul.f32 %v300, 2.4142137
  %v303 = vmul.f32 %v301, 2.4142137
  %vm304 = vcmp.gt.f32.partialorder %v298, %v302
  %vm305 = vcmp.gt.f32.partialorder %v299, %v303
  %v306 = vmul.f32 %v300, 0.41421357
  %v307 = vmul.f32 %v301, 0.41421357
  %vm308 = vcmp.gt.f32.partialorder %v298, %v306
  %vm309 = vcmp.gt.f32.partialorder %v299, %v307
  %v310 = vsub.f32 0.0, %v300
  %v311 = vsub.f32 0.0, %v301
  %v312 = vsub.f32 %v298, %v300
  %v313 = vsub.f32 %v299, %v301
  %v314 = vsel %vm308, %v312, %v298
  %v315 = vsel %vm309, %v313, %v299
  %v316 = vsel %vm304, %v310, %v314
  %v317 = vsel %vm305, %v311, %v315
  %v318 = vadd.f32 %v298, %v300
  %v319 = vadd.f32 %v299, %v301
  %v320 = vsel %vm308, %v318, %v300
  %v321 = vsel %vm309, %v319, %v301
  %v322 = vsel %vm304, %v298, %v320
  %v323 = vsel %vm305, %v299, %v321
  %v324 = vmax.f32 %v322, 1e-30
  %v325 = vmax.f32 %v323, 1e-30
  %v326 = vrcp.pop %v324
  %v327 = vrcp.pop %v325
  %v328 = vmul.f32 %v324, %v326
  %v329 = vmul.f32 %v325, %v327
  %v330 = vsub.f32 2.0, %v328
  %v331 = vsub.f32 2.0, %v329
  %v332 = vmul.f32 %v326, %v330
  %v333 = vmul.f32 %v327, %v331
  %v334 = vmul.f32 %v316, %v332
  %v335 = vmul.f32 %v317, %v333
  %v336 = vmul.f32 %v334, %v334
  %v337 = vmul.f32 %v335, %v335
  %v338 = vmul.f32 %v336, 0.080537446
  %v339 = vmul.f32 %v337, 0.080537446
  %v340 = vsub.f32 %v338, 0.13877685
  %v341 = vsub.f32 %v339, 0.13877685
  %v342 = vmul.f32 %v340, %v336
  %v343 = vmul.f32 %v341, %v337
  %v344 = vadd.f32 %v342, 0.19977711
  %v345 = vadd.f32 %v343, 0.19977711
  %v346 = vmul.f32 %v344, %v336
  %v347 = vmul.f32 %v345, %v337
  %v348 = vsub.f32 %v346, 0.3333295
  %v349 = vsub.f32 %v347, 0.3333295
  %v350 = vmul.f32 %v348, %v336
  %v351 = vmul.f32 %v349, %v337
  %v352 = vmul.f32 %v350, %v334
  %v353 = vmul.f32 %v351, %v335
  %v354 = vadd.f32 %v352, %v334
  %v355 = vadd.f32 %v353, %v335
  %v356 = vsel %vm308, 0.7853982, 0.0
  %v357 = vsel %vm309, 0.7853982, 0.0
  %v358 = vsel %vm304, 1.5707964, %v356
  %v359 = vsel %vm305, 1.5707964, %v357
  %v360 = vadd.f32 %v358, %v354
  %v361 = vadd.f32 %v359, %v355
  %vm362 = vcmp.lt.f32.partialorder %v268, 0.0
  %vm363 = vcmp.lt.f32.partialorder %v269, 0.0
  %v364 = vsub.f32 3.1415927, %v360
  %v365 = vsub.f32 3.1415927, %v361
  %v366 = vsel %vm362, %v364, %v360
  %v367 = vsel %vm363, %v365, %v361
  %vm368 = vcmp.lt.f32.partialorder %v296, 0.0
  %vm369 = vcmp.lt.f32.partialorder %v297, 0.0
  %v370 = vsub.f32 0.0, %v366
  %v371 = vsub.f32 0.0, %v367
  %v372 = vsel %vm368, %v370, %v366
  %v373 = vsel %vm369, %v371, %v367
  %v374 = vadd.f32 %v372, 3.1415927
  %v375 = vadd.f32 %v373, 3.1415927
  %v376 = vmul.f32 %v374, 0.15915494
  %v377 = vmul.f32 %v375, 0.15915494
  %s378 = scalar_lea.vmem %s1, 32
  %379 = vst [vmem:[%s378] sm:$0xff] %v376
  %380 = vst [vmem:[%s378 + $0x8] sm:$0xff] %v377
  %v381 = vmul.f32 %v69, %v121
  %v382 = vmul.f32 %v70, %v128
  %v383 = vmax.f32 %v381, 1e-07
  %v384 = vmax.f32 %v382, 1e-07
  %v385 = vlog2.pop %v383
  %v386 = vmul.f32 %v385, 0.6931472
  %v387 = vlog2.pop %v384
  %v388 = vmul.f32 %v387, 0.6931472
  %v389 = vsub.f32 0.0, %v386
  %v390 = vsub.f32 0.0, %v388
  %s391 = scalar_lea.vmem %s1, 48
  %392 = vst [vmem:[%s391] sm:$0xff] %v389
  %393 = vst [vmem:[%s391 + $0x8] sm:$0xff] %v390
  // Predicated region
  $region6: #{_lambda_.1} parent=0 // pred_check
    _
  $region7: #{_lambda_.1} parent=0 // pred_check_branch
    %395 = sbr.rel (0) target = $region9
  $region8: #{_lambda_.1} parent=0 // pred_region
    _
  $region9: #{_lambda_.1} parent=0 // pred_fallthru
    _
  // Predicated region
  $region10: #{_lambda_.1} parent=0 // pred_check
    _
  $region11: #{_lambda_.1} parent=0 // pred_check_branch
    %397 = sbr.rel (0) target = $region13
  $region12: #{_lambda_.1} parent=0 // pred_region
    _
  $region13: #{_lambda_.1} parent=0 // pred_fallthru
    _

</llo_original>
